<compile_context>
chip_gen: v6e
topology: v6e:2x2x1
jax: 0.10.0
libtpu: 0.0.40
codegen_flags: <defaults>
</compile_context>

<pallas_src>
import jax
import jax.numpy as jnp
from jax.experimental import pallas as pl
from jax.experimental.pallas import tpu as pltpu

KERNEL_SIZES = (2, 3, 4)
LANE = 128
SUB = 8
NEG = -1e30


def _round_up(x, m):
    return (x + m - 1) // m * m


def _cdiv(a, b):
    return (a + b - 1) // b


# ----------------------------------------------------------------------------
# Kernel
# ----------------------------------------------------------------------------
def _make_kernel(kernel_sizes, knum, npad, s_real, t_chunk, fuse_gather):
    """Fused (gather) + im2col-conv + time-max + bias/ReLU + FC kernel."""
    kmax = max(kernel_sizes)

    def body(emb, w_ref, b_conv_ref, fc_w_ref, fc_b_ref, out_ref):
        tb, sp, d = emb.shape
        emb = emb.astype(jnp.float32)           # f32 sublane rolls (native width)

        # Kmax time-shifted copies: rolled[k][:, t, :] == emb[:, (t+k) % sp, :].
        rolled = [emb] + [pltpu.roll(emb, shift=sp - k, axis=1)
                          for k in range(1, kmax)]

        # Per-lane valid-time limit: lane c*knum+j belongs to conv c (size Kc),
        # valid iff t <= s_real - Kc.  Padded lanes get limit = s_real (harmless,
        # their weight columns are zero).
        lane = jax.lax.broadcasted_iota(jnp.int32, (1, npad), 1)
        ksz = jnp.zeros((1, npad), jnp.int32)
        for c, K in enumerate(kernel_sizes):
            in_group = (lane >= c * knum) & (lane < (c + 1) * knum)
            ksz = jnp.where(in_group, K, ksz)
        limit = s_real - ksz                                     # (1, NPAD)

        running = jnp.full((tb, npad), NEG, jnp.float32)
        for t0 in range(0, sp, t_chunk):                         # static, aligned
            # im2col chunk: (TB, St, Kmax*D); slices are sublane-aligned.
            im = jnp.concatenate(
                [r[:, t0:t0 + t_chunk, :] for r in rolled], axis=-1)
            p = jnp.dot(im.reshape(tb * t_chunk, kmax * d).astype(w_ref.dtype),
                        w_ref[...], preferred_element_type=jnp.float32)
            p = p.reshape(tb, t_chunk, npad)
            t_idx = t0 + jax.lax.broadcasted_iota(jnp.int32, (t_chunk, 1), 0)
            valid = t_idx <= limit                               # (St, NPAD)
            p = jnp.where(valid[None, :, :], p, NEG)
            running = jnp.maximum(running, jnp.max(p, axis=1))   # (TB, NPAD)

        # bias + ReLU commute with the time max.
        feat = jnp.maximum(running + b_conv_ref[...], 0.0)       # (TB, NPAD) f32
        # TODO(synk): dropout omitted (eval-mode identity).
        logit = jnp.dot(feat.astype(fc_w_ref.dtype), fc_w_ref[...],
                        preferred_element_type=jnp.float32) + fc_b_ref[...]
        out_ref[...] = logit.astype(out_ref.dtype)

    if fuse_gather:
        def kernel(ids_ref, tab_ref, w_ref, b_conv_ref, fc_w_ref, fc_b_ref,
                   out_ref):
            ids = ids_ref[...]                                   # (TB, SP, 1) i32
            tb, sp, _ = ids.shape
            vpad, d = tab_ref.shape
            # Exact row gather as a one-hot MXU matmul (small-vocab path).
            onehot = (jax.lax.broadcasted_iota(jnp.int32, (tb, sp, vpad), 2)
                      == ids).astype(tab_ref.dtype)
            emb = jnp.dot(onehot.reshape(tb * sp, vpad), tab_ref[...],
                          preferred_element_type=jnp.float32)
            body(emb.reshape(tb, sp, d), w_ref, b_conv_ref, fc_w_ref, fc_b_ref,
                 out_ref)
    else:
        def kernel(emb_ref, w_ref, b_conv_ref, fc_w_ref, fc_b_ref, out_ref):
            body(emb_ref[...], w_ref, b_conv_ref, fc_w_ref, fc_b_ref, out_ref)

    return kernel


# ----------------------------------------------------------------------------
# Parameters (PyTorch layout) + packing into lane-dense kernel operands
# ----------------------------------------------------------------------------
def init_params(key, vocab_size, output_dim, embed_dim, kernel_num,
                kernel_sizes=KERNEL_SIZES, pad_idx=0):
    keys = iter(jax.random.split(key, 2 + 2 * len(kernel_sizes) + 2))
    emb = 0.1 * jax.random.normal(next(keys), (vocab_size, embed_dim), jnp.float32)
    if pad_idx is not None:
        emb = emb.at[pad_idx].set(0.0)
    conv_w, conv_b = [], []
    for K in kernel_sizes:
        conv_w.append(0.1 * jax.random.normal(
            next(keys), (kernel_num, 1, K, embed_dim), jnp.float32))
        conv_b.append(0.1 * jax.random.normal(next(keys), (kernel_num,), jnp.float32))
    fc_w = 0.1 * jax.random.normal(
        next(keys), (output_dim, len(kernel_sizes) * kernel_num), jnp.float32)
    fc_b = 0.1 * jax.random.normal(next(keys), (output_dim,), jnp.float32)
    return {"embedding": emb, "conv_w": conv_w, "conv_b": conv_b,
            "fc_w": fc_w, "fc_b": fc_b, "kernel_sizes": tuple(kernel_sizes)}


def pack_params(params, compute_dtype=jnp.bfloat16, max_fused_vocab_rows=4096):
    ks = tuple(params["kernel_sizes"])
    kmax = max(ks)
    knum = params["conv_w"][0].shape[0]
    vocab, embed_dim = params["embedding"].shape
    cla = params["fc_w"].shape[0]
    n_feat = len(ks) * knum
    npad = _round_up(n_feat, LANE)
    cla_pad = _round_up(cla, LANE)
    dtot = kmax * embed_dim

    # im2col conv weight (Kmax*D, NPAD): column c*knum+j, rows k*D+d hold
    # conv_w[c][j, 0, k, d]; rows for k >= Kc are zero (conv c ignores them).
    w = jnp.zeros((dtot, npad), jnp.float32)
    for c, cw in enumerate(params["conv_w"]):                  # (Knum, 1, K, D)
        K = cw.shape[2]
        blk = jnp.transpose(cw[:, 0, :, :], (1, 2, 0)).reshape(K * embed_dim, knum)
        w = w.at[:K * embed_dim, c * knum:(c + 1) * knum].set(blk)

    b_conv = jnp.zeros((1, npad), jnp.float32)
    for c, cb in enumerate(params["conv_b"]):
        b_conv = b_conv.at[0, c * knum:(c + 1) * knum].set(cb)

    fc_w = jnp.zeros((npad, cla_pad), jnp.float32)
    fc_w = fc_w.at[:n_feat, :cla].set(jnp.transpose(params["fc_w"]))
    fc_b = jnp.zeros((1, cla_pad), jnp.float32).at[0, :cla].set(params["fc_b"])

    vpad = _round_up(vocab, LANE)
    fuse_gather = vpad <= max_fused_vocab_rows
    table = None
    if fuse_gather:
        table = jnp.zeros((vpad, embed_dim), jnp.float32)
        table = table.at[:vocab].set(params["embedding"]).astype(compute_dtype)

    return {
        "kernel_sizes": ks, "knum": knum, "embed_dim": embed_dim,
        "npad": npad, "cla": cla, "cla_pad": cla_pad, "dtot": dtot,
        "w_conv": w.astype(compute_dtype),
        "b_conv": b_conv,                              # f32
        "fc_w": fc_w.astype(compute_dtype),
        "fc_b": fc_b,                                  # f32
        "embedding": params["embedding"].astype(compute_dtype),
        "table": table, "vpad": vpad, "fuse_gather": fuse_gather,
    }


# ----------------------------------------------------------------------------
# Wrapper
# ----------------------------------------------------------------------------
def _vmem_budget_bytes():
    # ~100 MiB on 128-MiB chips (v5e/v6e); <= ~45 MiB on v7x (64 MiB physical).
    try:
        cap = int(pltpu.get_tpu_info().vmem_capacity_bytes)
    except Exception:
        cap = 64 * 1024 * 1024                         # conservative (v7x-safe)
    return min(int(cap * 0.7), 100 * 1024 * 1024)


def _derive_block_b(batch, per_row_bytes, fixed_bytes, budget):
    usable = max(budget - fixed_bytes, 1 * 1024 * 1024)
    bb = usable // max(per_row_bytes, 1)
    bb = max(SUB, min(bb, 1024, _round_up(batch, SUB)))
    bb = bb // SUB * SUB
    # Prefer an even number of grid steps (v7x shards "parallel" grid over 2 TCs).
    steps = _cdiv(batch, bb)
    if steps > 1 and steps % 2 == 1:
        steps += 1
        bb = max(SUB, _round_up(_cdiv(batch, steps), SUB))
        steps = _cdiv(batch, bb)
    return bb, steps * bb


def _resident_spec(shape):
    """Constant-index-map (resident) operand; single-buffered when supported."""
    imap = lambda i: (0,) * len(shape)
    try:
        return pl.BlockSpec(shape, imap, pipeline_mode=pl.Buffered(1))
    except (TypeError, AttributeError):
        return pl.BlockSpec(shape, imap)


def textcnn_forward(packed, x_ids, x_len=None, *, block_b=None, time_chunk=16,
                    vmem_budget_bytes=None, interpret=False):
    """x_ids: (seq_len, batch) int32 token ids.  x_len unused (matches PyTorch)."""
    del x_len
    ks = packed["kernel_sizes"]
    kmax = max(ks)
    knum, npad = packed["knum"], packed["npad"]
    cla, cla_pad = packed["cla"], packed["cla_pad"]
    d, dtot = packed["embed_dim"], packed["dtot"]
    vpad, fuse = packed["vpad"], packed["fuse_gather"]

    s_real, batch = x_ids.shape
    assert s_real >= kmax, "sequence shorter than the largest conv kernel"
    s_pad = max(_round_up(s_real, SUB), SUB)

    # Sublane-aligned time chunk that divides s_pad (bounds the P intermediate).
    st = max(SUB, min(_round_up(time_chunk, SUB), s_pad))
    while s_pad % st:
        st -= SUB

    # ids -> batch-major (B, S_pad); pad the int32 ids, never bf16 activations.
    ids = jnp.transpose(x_ids).astype(jnp.int32)
    if s_pad != s_real:
        ids = jnp.pad(ids, ((0, 0), (0, s_pad - s_real)))

    budget = int(vmem_budget_bytes or _vmem_budget_bytes())
    bf16 = 2
    per_row = (s_pad * 4 * 2                                        # ids, 2 bufs
               + (s_pad * vpad * 6 if fuse else s_pad * d * bf16 * 2)  # gather
               + (kmax + 1) * s_pad * d * 4                         # f32 rolls
               + st * dtot * 4                                      # im2col chunk
               + 2 * st * npad * 4                                  # P chunk
               + 4 * npad * 4 + cla_pad * 4 * 2)
    fixed = ((vpad * d * bf16 if fuse else 0) + dtot * npad * bf16
             + npad * cla_pad * bf16 + (npad + cla_pad) * 4)
    fixed = 2 * fixed + (2 << 20)                                   # scratch slack
    if block_b is None:
        bb, b_pad = _derive_block_b(batch, int(per_row * 1.5), fixed, budget)
    else:
        bb = max(SUB, (block_b // SUB) * SUB)
        b_pad = _round_up(batch, bb)

    if b_pad != batch:
        ids = jnp.pad(ids, ((0, b_pad - batch), (0, 0)))
    grid = (b_pad // bb,)

    kernel = _make_kernel(ks, knum, npad, s_real, st, fuse)

    if fuse:
        first_arg = ids.reshape(b_pad, s_pad, 1)
        first_spec = pl.BlockSpec((bb, s_pad, 1), lambda i: (i, 0, 0))
        gather_in = [packed["table"]]
        gather_specs = [_resident_spec((vpad, d))]
        gather_flops = 2 * b_pad * s_pad * vpad * d
        in_bytes = b_pad * s_pad * 4 + vpad * d * bf16
    else:
        # Large-vocab fallback: XLA gather outside the kernel.
        first_arg = jnp.take(packed["embedding"], ids, axis=0)     # (B, S, D) bf16
        first_spec = pl.BlockSpec((bb, s_pad, d), lambda i: (i, 0, 0))
        gather_in, gather_specs, gather_flops = [], [], 0
        in_bytes = b_pad * s_pad * d * bf16

    flops = (gather_flops + 2 * b_pad * s_pad * dtot * npad
             + 2 * b_pad * npad * cla_pad)
    bytes_accessed = (in_bytes + dtot * npad * bf16 + npad * cla_pad * bf16
                      + (npad + cla_pad) * 4 + b_pad * cla_pad * bf16)

    out = pl.pallas_call(
        kernel,
        out_shape=jax.ShapeDtypeStruct((b_pad, cla_pad), jnp.bfloat16),
        grid=grid,
        in_specs=[first_spec] + gather_specs + [
            _resident_spec((dtot, npad)),        # packed im2col conv weight
            _resident_spec((1, npad)),           # conv biases
            _resident_spec((npad, cla_pad)),     # fc weight
            _resident_spec((1, cla_pad)),        # fc bias
        ],
        out_specs=pl.BlockSpec((bb, cla_pad), lambda i: (i, 0)),
        compiler_params=pltpu.CompilerParams(
            dimension_semantics=("parallel",),
            vmem_limit_bytes=budget),
        cost_estimate=pl.CostEstimate(flops=int(flops), transcendentals=0,
                                      bytes_accessed=int(bytes_accessed)),
        interpret=interpret,
    )(first_arg, *gather_in, packed["w_conv"], packed["b_conv"],
      packed["fc_w"], packed["fc_b"])

    return out[:batch, :cla].astype(jnp.float32)


# ----------------------------------------------------------------------------
# Pure-JAX f32 reference matching the PyTorch module (eval mode)
# ----------------------------------------------------------------------------
def ref_forward(params, x_ids):
    emb = jnp.take(params["embedding"], jnp.transpose(x_ids), axis=0)  # (B,S,D)
    S = emb.shape[1]
    feats = []
    for w, b in zip(params["conv_w"], params["conv_b"]):
        K = w.shape[2]
        outs = []
        for t in range(S - K + 1):
            win = emb[:, t:t + K, :]                               # (B, K, D)
            outs.append(jnp.einsum("bkd,nkd->bn", win, w[:, 0]) + b)
        conv = jnp.maximum(jnp.stack(outs, axis=-1), 0.0)          # (B, Knum, T)
        feats.append(jnp.max(conv, axis=-1))
    feat = jnp.concatenate(feats, axis=1)
    return feat @ jnp.transpose(params["fc_w"]) + params["fc_b"]


if __name__ == "__main__":
    # Small synthetic config consistent with the module's forward.
    vocab_size = 50
    output_dim = 4
    embed_dim = 32
    kernel_num = 16
    seq_len = 8
    batch = 16
    pad_idx = 0

    key = jax.random.PRNGKey(0)
    pkey, xkey = jax.random.split(key)

    params = init_params(pkey, vocab_size, output_dim, embed_dim,
                         kernel_num, pad_idx=pad_idx)
    packed = pack_params(params)

    # token ids, shape (seq_len, batch) as implied by transpose(1, 0) in forward
    x_ids = jax.random.randint(xkey, (seq_len, batch), 0, vocab_size,
                               dtype=jnp.int32)
    x_len = jnp.full((batch,), seq_len, dtype=jnp.int32)

    logits = textcnn_forward(packed, x_ids, x_len)
    jax.block_until_ready(logits)
    assert logits.shape == (batch, output_dim)

    ref = ref_forward(params, x_ids)
    max_err = float(jnp.max(jnp.abs(logits - ref)))
    assert max_err < 5e-2, f"mismatch vs reference: max abs err {max_err}"

    print("KERNEL_OK")
</pallas_src>

<mosaic_0001>
module attributes {stable_mosaic.version = 11 : i64} {
  func.func @kernel(%arg0: i32, %arg1: memref<16x8x1xi32, #tpu.memory_space<vmem>>, %arg2: memref<128x32xbf16, #tpu.memory_space<vmem>>, %arg3: memref<128x128xbf16, #tpu.memory_space<vmem>>, %arg4: memref<1x128xf32, #tpu.memory_space<vmem>>, %arg5: memref<128x128xbf16, #tpu.memory_space<vmem>>, %arg6: memref<1x128xf32, #tpu.memory_space<vmem>>, %arg7: memref<16x128xbf16, #tpu.memory_space<vmem>>) attributes {dimension_semantics = [#tpu.dimension_semantics<parallel>], iteration_bounds = array<i64: 1>, scalar_prefetch = 0 : i64, scratch_operands = 0 : i64, tpu.core_type = #tpu.core_type<tc>, window_params = [{transform_indices = @transform_0, window_bounds = array<i64: 16, 8, 1>}, {pipeline_mode = #tpu.pipeline_mode<synchronous>, transform_indices = @transform_1, window_bounds = array<i64: 128, 32>}, {pipeline_mode = #tpu.pipeline_mode<synchronous>, transform_indices = @transform_2, window_bounds = array<i64: 128, 128>}, {pipeline_mode = #tpu.pipeline_mode<synchronous>, transform_indices = @transform_3, window_bounds = array<i64: 1, 128>}, {pipeline_mode = #tpu.pipeline_mode<synchronous>, transform_indices = @transform_4, window_bounds = array<i64: 128, 128>}, {pipeline_mode = #tpu.pipeline_mode<synchronous>, transform_indices = @transform_5, window_bounds = array<i64: 1, 128>}, {transform_indices = @transform_6, window_bounds = array<i64: 16, 128>}]} {
    %c0 = arith.constant 0 : index
    %c0_0 = arith.constant 0 : index
    %c0_1 = arith.constant 0 : index
    %0 = vector.load %arg1[%c0, %c0_0, %c0_1] : memref<16x8x1xi32, #tpu.memory_space<vmem>>, vector<16x8x1xi32>
    %1 = tpu.iota {dimensions = array<i32: 2>} : vector<16x8x128xi32>
    %2 = vector.broadcast %0 : vector<16x8x1xi32> to vector<16x8x128xi32>
    %3 = arith.cmpi eq, %1, %2 : vector<16x8x128xi32>
    %4 = arith.extui %3 : vector<16x8x128xi1> to vector<16x8x128xi32>
    %5 = arith.sitofp %4 : vector<16x8x128xi32> to vector<16x8x128xf32>
    %6 = arith.truncf %5 : vector<16x8x128xf32> to vector<16x8x128xbf16>
    %7 = vector.shape_cast %6 : vector<16x8x128xbf16> to vector<128x128xbf16>
    %c0_2 = arith.constant 0 : index
    %c0_3 = arith.constant 0 : index
    %8 = vector.load %arg2[%c0_2, %c0_3] : memref<128x32xbf16, #tpu.memory_space<vmem>>, vector<128x32xbf16>
    %cst = arith.constant dense<0.000000e+00> : vector<128x32xf32>
    %9 = tpu.matmul %7, %8, %cst {dimension_numbers = #tpu.dot_dimension_numbers<[1], [0], [0], [1], [0, 0, 1, 1], [], []>} : vector<128x128xbf16>, vector<128x32xbf16>, vector<128x32xf32> -> vector<128x32xf32>
    %10 = vector.shape_cast %9 : vector<128x32xf32> to vector<16x8x32xf32>
    %c7_i32 = arith.constant 7 : i32
    %11 = tpu.dynamic_rotate %10 by %c7_i32 dim 1 : vector<16x8x32xf32>, i32 -> vector<16x8x32xf32>
    %c6_i32 = arith.constant 6 : i32
    %12 = tpu.dynamic_rotate %10 by %c6_i32 dim 1 : vector<16x8x32xf32>, i32 -> vector<16x8x32xf32>
    %c5_i32 = arith.constant 5 : i32
    %13 = tpu.dynamic_rotate %10 by %c5_i32 dim 1 : vector<16x8x32xf32>, i32 -> vector<16x8x32xf32>
    %14 = tpu.iota {dimensions = array<i32: 1>} : vector<1x128xi32>
    %c0_i32 = arith.constant 0 : i32
    %15 = vector.broadcast %c0_i32 : i32 to vector<1x128xi32>
    %c0_i32_4 = arith.constant 0 : i32
    %16 = vector.broadcast %c0_i32_4 : i32 to vector<1x128xi32>
    %17 = arith.cmpi sge, %14, %16 : vector<1x128xi32>
    %c16_i32 = arith.constant 16 : i32
    %18 = vector.broadcast %c16_i32 : i32 to vector<1x128xi32>
    %19 = arith.cmpi slt, %14, %18 : vector<1x128xi32>
    %20 = arith.andi %17, %19 : vector<1x128xi1>
    %c2_i32 = arith.constant 2 : i32
    %21 = vector.broadcast %c2_i32 : i32 to vector<1x128xi32>
    %22 = arith.select %20, %21, %15 : vector<1x128xi1>, vector<1x128xi32>
    %c16_i32_5 = arith.constant 16 : i32
    %23 = vector.broadcast %c16_i32_5 : i32 to vector<1x128xi32>
    %24 = arith.cmpi sge, %14, %23 : vector<1x128xi32>
    %c32_i32 = arith.constant 32 : i32
    %25 = vector.broadcast %c32_i32 : i32 to vector<1x128xi32>
    %26 = arith.cmpi slt, %14, %25 : vector<1x128xi32>
    %27 = arith.andi %24, %26 : vector<1x128xi1>
    %c3_i32 = arith.constant 3 : i32
    %28 = vector.broadcast %c3_i32 : i32 to vector<1x128xi32>
    %29 = arith.select %27, %28, %22 : vector<1x128xi1>, vector<1x128xi32>
    %c32_i32_6 = arith.constant 32 : i32
    %30 = vector.broadcast %c32_i32_6 : i32 to vector<1x128xi32>
    %31 = arith.cmpi sge, %14, %30 : vector<1x128xi32>
    %c48_i32 = arith.constant 48 : i32
    %32 = vector.broadcast %c48_i32 : i32 to vector<1x128xi32>
    %33 = arith.cmpi slt, %14, %32 : vector<1x128xi32>
    %34 = arith.andi %31, %33 : vector<1x128xi1>
    %c4_i32 = arith.constant 4 : i32
    %35 = vector.broadcast %c4_i32 : i32 to vector<1x128xi32>
    %36 = arith.select %34, %35, %29 : vector<1x128xi1>, vector<1x128xi32>
    %c8_i32 = arith.constant 8 : i32
    %37 = vector.broadcast %c8_i32 : i32 to vector<1x128xi32>
    %38 = arith.subi %37, %36 : vector<1x128xi32>
    %cst_7 = arith.constant -1.000000e+30 : f32
    %39 = vector.broadcast %cst_7 : f32 to vector<16x128xf32>
    %40 = tpu.concatenate %10, %11, %12, %13 in 2 : vector<16x8x32xf32>, vector<16x8x32xf32>, vector<16x8x32xf32>, vector<16x8x32xf32> -> vector<16x8x128xf32>
    %41 = vector.shape_cast %40 : vector<16x8x128xf32> to vector<128x128xf32>
    %42 = arith.truncf %41 : vector<128x128xf32> to vector<128x128xbf16>
    %c0_8 = arith.constant 0 : index
    %c0_9 = arith.constant 0 : index
    %43 = vector.load %arg3[%c0_8, %c0_9] : memref<128x128xbf16, #tpu.memory_space<vmem>>, vector<128x128xbf16>
    %cst_10 = arith.constant dense<0.000000e+00> : vector<128x128xf32>
    %44 = tpu.matmul %42, %43, %cst_10 {dimension_numbers = #tpu.dot_dimension_numbers<[1], [0], [0], [1], [0, 0, 1, 1], [], []>} : vector<128x128xbf16>, vector<128x128xbf16>, vector<128x128xf32> -> vector<128x128xf32>
    %45 = vector.shape_cast %44 : vector<128x128xf32> to vector<16x8x128xf32>
    %46 = tpu.iota {dimensions = array<i32: 0>} : vector<8x1xi32>
    %c0_i32_11 = arith.constant 0 : i32
    %47 = vector.broadcast %c0_i32_11 : i32 to vector<8x1xi32>
    %48 = arith.addi %47, %46 : vector<8x1xi32>
    %49 = vector.broadcast %48 : vector<8x1xi32> to vector<8x128xi32>
    %50 = vector.broadcast %38 : vector<1x128xi32> to vector<8x128xi32>
    %51 = arith.cmpi sle, %49, %50 : vector<8x128xi32>
    %52 = vector.shape_cast %51 : vector<8x128xi1> to vector<1x8x128xi1>
    %cst_12 = arith.constant -1.000000e+30 : f32
    %53 = vector.shape_cast %52 : vector<1x8x128xi1> to vector<1x8x128xi1>
    %54 = vector.broadcast %53 : vector<1x8x128xi1> to vector<16x8x128xi1>
    %55 = vector.broadcast %cst_12 : f32 to vector<16x8x128xf32>
    %56 = arith.select %54, %45, %55 : vector<16x8x128xi1>, vector<16x8x128xf32>
    %cst_13 = arith.constant dense<0xFF800000> : vector<16x128xf32>
    %57 = vector.multi_reduction <maximumf>, %56, %cst_13 [1] : vector<16x8x128xf32> to vector<16x128xf32>
    %58 = arith.maximumf %39, %57 : vector<16x128xf32>
    %c0_14 = arith.constant 0 : index
    %c0_15 = arith.constant 0 : index
    %59 = vector.load %arg4[%c0_14, %c0_15] : memref<1x128xf32, #tpu.memory_space<vmem>>, vector<1x128xf32>
    %60 = vector.broadcast %59 : vector<1x128xf32> to vector<16x128xf32>
    %61 = arith.addf %58, %60 : vector<16x128xf32>
    %cst_16 = arith.constant 0.000000e+00 : f32
    %62 = vector.broadcast %cst_16 : f32 to vector<16x128xf32>
    %63 = arith.maximumf %61, %62 : vector<16x128xf32>
    %64 = arith.truncf %63 : vector<16x128xf32> to vector<16x128xbf16>
    %c0_17 = arith.constant 0 : index
    %c0_18 = arith.constant 0 : index
    %65 = vector.load %arg5[%c0_17, %c0_18] : memref<128x128xbf16, #tpu.memory_space<vmem>>, vector<128x128xbf16>
    %cst_19 = arith.constant dense<0.000000e+00> : vector<16x128xf32>
    %66 = tpu.matmul %64, %65, %cst_19 {dimension_numbers = #tpu.dot_dimension_numbers<[1], [0], [0], [1], [0, 0, 1, 1], [], []>} : vector<16x128xbf16>, vector<128x128xbf16>, vector<16x128xf32> -> vector<16x128xf32>
    %c0_20 = arith.constant 0 : index
    %c0_21 = arith.constant 0 : index
    %67 = vector.load %arg6[%c0_20, %c0_21] : memref<1x128xf32, #tpu.memory_space<vmem>>, vector<1x128xf32>
    %68 = vector.broadcast %67 : vector<1x128xf32> to vector<16x128xf32>
    %69 = arith.addf %66, %68 : vector<16x128xf32>
    %70 = arith.truncf %69 : vector<16x128xf32> to vector<16x128xbf16>
    %c0_22 = arith.constant 0 : index
    %c0_23 = arith.constant 0 : index
    %71 = vector.load %arg7[%c0_22, %c0_23] : memref<16x128xbf16, #tpu.memory_space<vmem>>, vector<16x128xbf16>
    tpu.vector_store %arg7[%c0_22, %c0_23], %70 {strides = array<i32>} : memref<16x128xbf16, #tpu.memory_space<vmem>>, vector<16x128xbf16>,
    return
  }
  func.func @transform_0(%arg0: i32) -> (i32, i32, i32) {
    %c0_i32 = arith.constant 0 : i32
    %c0_i32_0 = arith.constant 0 : i32
    %c0_i32_1 = arith.constant 0 : i32
    return %arg0, %c0_i32, %c0_i32_0 : i32, i32, i32
  }
  func.func @transform_1(%arg0: i32) -> (i32, i32) {
    %c0_i32 = arith.constant 0 : i32
    %c0_i32_0 = arith.constant 0 : i32
    %c0_i32_1 = arith.constant 0 : i32
    return %c0_i32, %c0_i32_0 : i32, i32
  }
  func.func @transform_2(%arg0: i32) -> (i32, i32) {
    %c0_i32 = arith.constant 0 : i32
    %c0_i32_0 = arith.constant 0 : i32
    %c0_i32_1 = arith.constant 0 : i32
    return %c0_i32, %c0_i32_0 : i32, i32
  }
  func.func @transform_3(%arg0: i32) -> (i32, i32) {
    %c0_i32 = arith.constant 0 : i32
    %c0_i32_0 = arith.constant 0 : i32
    %c0_i32_1 = arith.constant 0 : i32
    return %c0_i32, %c0_i32_0 : i32, i32
  }
  func.func @transform_4(%arg0: i32) -> (i32, i32) {
    %c0_i32 = arith.constant 0 : i32
    %c0_i32_0 = arith.constant 0 : i32
    %c0_i32_1 = arith.constant 0 : i32
    return %c0_i32, %c0_i32_0 : i32, i32
  }
  func.func @transform_5(%arg0: i32) -> (i32, i32) {
    %c0_i32 = arith.constant 0 : i32
    %c0_i32_0 = arith.constant 0 : i32
    %c0_i32_1 = arith.constant 0 : i32
    return %c0_i32, %c0_i32_0 : i32, i32
  }
  func.func @transform_6(%arg0: i32) -> (i32, i32) {
    %c0_i32 = arith.constant 0 : i32
    %c0_i32_0 = arith.constant 0 : i32
    return %arg0, %c0_i32 : i32, i32
  }
}

</mosaic_0001>

<llo_original>
// kernel: tpu_custom_call.1
$region0: #{tpu_custom_call.1}
  #allocation0 [shape = 'u32[]', space=smem, size = 0x4, offset = 0x4, fixed_abs, tag = 'smem constant byte address 0x4 - core index']
  #allocation1 [shape = 'u32[144,128]{1,0:T(1,128)}', space=vmem, size = 0x12000, scoped, tag = 'internal scratch']
  %s0 = inlined_call_operand.vmem [shape: s32[16,8,1], index: 0, kind: input, shape index: {}]
  %s1 = inlined_call_operand.vmem [shape: bf16[128,32], index: 1, kind: input, shape index: {}]
  %s2 = inlined_call_operand.vmem [shape: bf16[128,128], index: 2, kind: input, shape index: {}]
  %s3 = inlined_call_operand.vmem [shape: f32[1,128], index: 3, kind: input, shape index: {}]
  %s4 = inlined_call_operand.vmem [shape: bf16[128,128], index: 4, kind: input, shape index: {}]
  %s5 = inlined_call_operand.vmem [shape: f32[1,128], index: 5, kind: input, shape index: {}]
  %s6 = inlined_call_operand.hbm [shape: bf16[16,128], index: 6, kind: output, shape index: {}]
  %s7 = sld [smem:[#allocation0]]
  $region34: #{tpu_custom_call.1} parent=0
    _
  %s9 = ssub.s32 1, %s7
  %s10 = scalar_select 0, %s9, %s7
  $region1: #{tpu_custom_call.1} parent=0
    #allocation2 [shape = 'u8[4096]{0}', space=vmem, size = 0x1000, scoped, tag = 'output window, operand 0, single buffered']
    #allocation3 [shape = 's32[1]{0}', space=sflag, size = 0x4, scoped, tag = 'scoped memory for tpu_custom_call.1']
    %11 = vsyncpa [#allocation3], 0
    // Predicated region
    $region2: #{tpu_custom_call.1} parent=1 // pred_check
      _
    $region3: #{tpu_custom_call.1} parent=1 // pred_check_branch
      %13 = sbr.rel (0) target = $region5
    $region4: #{tpu_custom_call.1} parent=1 // pred_region
      _
    $region5: #{tpu_custom_call.1} parent=1 // pred_fallthru
      _
    // Predicated region
    $region6: #{tpu_custom_call.1} parent=1 // pred_check
      _
    $region7: #{tpu_custom_call.1} parent=1 // pred_check_branch
      %15 = sbr.rel (0) target = $region9
    $region8: #{tpu_custom_call.1} parent=1 // pred_region
      _
    $region9: #{tpu_custom_call.1} parent=1 // pred_fallthru
      _
    // Predicated region
    $region10: #{tpu_custom_call.1} parent=1 // pred_check
      _
    $region11: #{tpu_custom_call.1} parent=1 // pred_check_branch
      %17 = sbr.rel (0) target = $region13
    $region12: #{tpu_custom_call.1} parent=1 // pred_region
      _
    $region13: #{tpu_custom_call.1} parent=1 // pred_fallthru
      _
    // Predicated region
    $region14: #{tpu_custom_call.1} parent=1 // pred_check
      _
    $region15: #{tpu_custom_call.1} parent=1 // pred_check_branch
      %19 = sbr.rel (0) target = $region17
    $region16: #{tpu_custom_call.1} parent=1 // pred_region
      _
    $region17: #{tpu_custom_call.1} parent=1 // pred_fallthru
      _
    // Predicated region
    $region18: #{tpu_custom_call.1} parent=1 // pred_check
      _
    $region19: #{tpu_custom_call.1} parent=1 // pred_check_branch
      %21 = sbr.rel (0) target = $region21
    $region20: #{tpu_custom_call.1} parent=1 // pred_region
      _
    $region21: #{tpu_custom_call.1} parent=1 // pred_fallthru
      _
    // Predicated region
    $region22: #{tpu_custom_call.1} parent=1 // pred_check
      _
    $region23: #{tpu_custom_call.1} parent=1 // pred_check_branch
      %23 = sbr.rel (0) target = $region25
    $region24: #{tpu_custom_call.1} parent=1 // pred_region
      _
    $region25: #{tpu_custom_call.1} parent=1 // pred_fallthru
      _
    %v25 = vld [vmem:[%s0] sm:$0xff]
    %v26 = vld [vmem:[%s0 + $0x8] sm:$0xff]
    %v27 = vld [vmem:[%s0 + $0x10] sm:$0xff]
    %v28 = vld [vmem:[%s0 + $0x18] sm:$0xff]
    %v29 = vld [vmem:[%s0 + $0x20] sm:$0xff]
    %v30 = vld [vmem:[%s0 + $0x28] sm:$0xff]
    %v31 = vld [vmem:[%s0 + $0x30] sm:$0xff]
    %v32 = vld [vmem:[%s0 + $0x38] sm:$0xff]
    %v33 = vld [vmem:[%s0 + $0x40] sm:$0xff]
    %v34 = vld [vmem:[%s0 + $0x48] sm:$0xff]
    %v35 = vld [vmem:[%s0 + $0x50] sm:$0xff]
    %v36 = vld [vmem:[%s0 + $0x58] sm:$0xff]
    %v37 = vld [vmem:[%s0 + $0x60] sm:$0xff]
    %v38 = vld [vmem:[%s0 + $0x68] sm:$0xff]
    %v39 = vld [vmem:[%s0 + $0x70] sm:$0xff]
    %v40 = vld [vmem:[%s0 + $0x78] sm:$0xff]
    %v41 = vlaneseq
    %v42 = vand.u32 %v41, 127
    %43 = vset.pattern.permute.xlu0 0
    %44 = vperm.xlu0 %43, %v25
    %v45 = vpop.permute.xlu0 %44
    %46 = vset.pattern.permute.xlu0 0
    %47 = vperm.xlu0 %46, %v26
    %v48 = vpop.permute.xlu0 %47
    %49 = vset.pattern.permute.xlu0 0
    %50 = vperm.xlu0 %49, %v27
    %v51 = vpop.permute.xlu0 %50
    %52 = vset.pattern.permute.xlu0 0
    %53 = vperm.xlu0 %52, %v28
    %v54 = vpop.permute.xlu0 %53
    %55 = vset.pattern.permute.xlu0 0
    %56 = vperm.xlu0 %55, %v29
    %v57 = vpop.permute.xlu0 %56
    %58 = vset.pattern.permute.xlu0 0
    %59 = vperm.xlu0 %58, %v30
    %v60 = vpop.permute.xlu0 %59
    %61 = vset.pattern.permute.xlu0 0
    %62 = vperm.xlu0 %61, %v31
    %v63 = vpop.permute.xlu0 %62
    %64 = vset.pattern.permute.xlu0 0
    %65 = vperm.xlu0 %64, %v32
    %v66 = vpop.permute.xlu0 %65
    %67 = vset.pattern.permute.xlu0 0
    %68 = vperm.xlu0 %67, %v33
    %v69 = vpop.permute.xlu0 %68
    %70 = vset.pattern.permute.xlu0 0
    %71 = vperm.xlu0 %70, %v34
    %v72 = vpop.permute.xlu0 %71
    %73 = vset.pattern.permute.xlu0 0
    %74 = vperm.xlu0 %73, %v35
    %v75 = vpop.permute.xlu0 %74
    %76 = vset.pattern.permute.xlu0 0
    %77 = vperm.xlu0 %76, %v36
    %v78 = vpop.permute.xlu0 %77
    %79 = vset.pattern.permute.xlu0 0
    %80 = vperm.xlu0 %79, %v37
    %v81 = vpop.permute.xlu0 %80
    %82 = vset.pattern.permute.xlu0 0
    %83 = vperm.xlu0 %82, %v38
    %v84 = vpop.permute.xlu0 %83
    %85 = vset.pattern.permute.xlu0 0
    %86 = vperm.xlu0 %85, %v39
    %v87 = vpop.permute.xlu0 %86
    %88 = vset.pattern.permute.xlu0 0
    %89 = vperm.xlu0 %88, %v40
    %v90 = vpop.permute.xlu0 %89
    %vm91 = vcmp.eq.s32.totalorder %v42, %v45
    %vm92 = vcmp.eq.s32.totalorder %v42, %v48
    %vm93 = vcmp.eq.s32.totalorder %v42, %v51
    %vm94 = vcmp.eq.s32.totalorder %v42, %v54
    %vm95 = vcmp.eq.s32.totalorder %v42, %v57
    %vm96 = vcmp.eq.s32.totalorder %v42, %v60
    %vm97 = vcmp.eq.s32.totalorder %v42, %v63
    %vm98 = vcmp.eq.s32.totalorder %v42, %v66
    %vm99 = vcmp.eq.s32.totalorder %v42, %v69
    %vm100 = vcmp.eq.s32.totalorder %v42, %v72
    %vm101 = vcmp.eq.s32.totalorder %v42, %v75
    %vm102 = vcmp.eq.s32.totalorder %v42, %v78
    %vm103 = vcmp.eq.s32.totalorder %v42, %v81
    %vm104 = vcmp.eq.s32.totalorder %v42, %v84
    %vm105 = vcmp.eq.s32.totalorder %v42, %v87
    %vm106 = vcmp.eq.s32.totalorder %v42, %v90
    %v107 = vsel %vm91, 1, 0
    %v108 = vsel %vm92, 1, 0
    %v109 = vsel %vm93, 1, 0
    %v110 = vsel %vm94, 1, 0
    %v111 = vsel %vm95, 1, 0
    %v112 = vsel %vm96, 1, 0
    %v113 = vsel %vm97, 1, 0
    %v114 = vsel %vm98, 1, 0
    %v115 = vsel %vm99, 1, 0
    %v116 = vsel %vm100, 1, 0
    %v117 = vsel %vm101, 1, 0
    %v118 = vsel %vm102, 1, 0
    %v119 = vsel %vm103, 1, 0
    %v120 = vsel %vm104, 1, 0
    %v121 = vsel %vm105, 1, 0
    %v122 = vsel %vm106, 1, 0
    %v123 = vcvt.s32.f32 %v107
    %v124 = vcvt.s32.f32 %v108
    %v125 = vcvt.s32.f32 %v109
    %v126 = vcvt.s32.f32 %v110
    %v127 = vcvt.s32.f32 %v111
    %v128 = vcvt.s32.f32 %v112
    %v129 = vcvt.s32.f32 %v113
    %v130 = vcvt.s32.f32 %v114
    %v131 = vcvt.s32.f32 %v115
    %v132 = vcvt.s32.f32 %v116
    %v133 = vcvt.s32.f32 %v117
    %v134 = vcvt.s32.f32 %v118
    %v135 = vcvt.s32.f32 %v119
    %v136 = vcvt.s32.f32 %v120
    %v137 = vcvt.s32.f32 %v121
    %v138 = vcvt.s32.f32 %v122
    %v139 = vpack.c.bf16 %v123, %v123
    %v140 = vpack.c.bf16 %v124, %v124
    %v141 = vpack.c.bf16 %v125, %v125
    %v142 = vpack.c.bf16 %v126, %v126
    %v143 = vpack.c.bf16 %v127, %v127
    %v144 = vpack.c.bf16 %v128, %v128
    %v145 = vpack.c.bf16 %v129, %v129
    %v146 = vpack.c.bf16 %v130, %v130
    %v147 = vpack.c.bf16 %v131, %v131
    %v148 = vpack.c.bf16 %v132, %v132
    %v149 = vpack.c.bf16 %v133, %v133
    %v150 = vpack.c.bf16 %v134, %v134
    %v151 = vpack.c.bf16 %v135, %v135
    %v152 = vpack.c.bf16 %v136, %v136
    %v153 = vpack.c.bf16 %v137, %v137
    %v154 = vpack.c.bf16 %v138, %v138
    %v155 = vld [vmem:[%s1] sm:$0xf]
    %v156 = vld [vmem:[%s1 + $0x4] sm:$0xf]
    %v157 = vld [vmem:[%s1 + $0x8] sm:$0xf]
    %v158 = vld [vmem:[%s1 + $0xc] sm:$0xf]
    %v159 = vld [vmem:[%s1 + $0x10] sm:$0xf]
    %v160 = vld [vmem:[%s1 + $0x14] sm:$0xf]
    %v161 = vld [vmem:[%s1 + $0x18] sm:$0xf]
    %v162 = vld [vmem:[%s1 + $0x1c] sm:$0xf]
    %v163 = vld [vmem:[%s1 + $0x20] sm:$0xf]
    %v164 = vld [vmem:[%s1 + $0x24] sm:$0xf]
    %v165 = vld [vmem:[%s1 + $0x28] sm:$0xf]
    %v166 = vld [vmem:[%s1 + $0x2c] sm:$0xf]
    %v167 = vld [vmem:[%s1 + $0x30] sm:$0xf]
    %v168 = vld [vmem:[%s1 + $0x34] sm:$0xf]
    %v169 = vld [vmem:[%s1 + $0x38] sm:$0xf]
    %v170 = vld [vmem:[%s1 + $0x3c] sm:$0xf]
    %v187 = vunpack.c.l.b16 %v139
    %v188 = vunpack.c.l.b16 %v140
    %v189 = vunpack.c.l.b16 %v141
    %v190 = vunpack.c.l.b16 %v142
    %v191 = vunpack.c.l.b16 %v143
    %v192 = vunpack.c.l.b16 %v144
    %v193 = vunpack.c.l.b16 %v145
    %v194 = vunpack.c.l.b16 %v146
    %v195 = vunpack.c.l.b16 %v147
    %v196 = vunpack.c.l.b16 %v148
    %v197 = vunpack.c.l.b16 %v149
    %v198 = vunpack.c.l.b16 %v150
    %v199 = vunpack.c.l.b16 %v151
    %v200 = vunpack.c.l.b16 %v152
    %v201 = vunpack.c.l.b16 %v153
    %v202 = vunpack.c.l.b16 %v154
    %v203 = vpack.c.b16 %v188, %v187
    %v204 = vpack.c.b16 %v190, %v189
    %v205 = vpack.c.b16 %v192, %v191
    %v206 = vpack.c.b16 %v194, %v193
    %v207 = vpack.c.b16 %v196, %v195
    %v208 = vpack.c.b16 %v198, %v197
    %v209 = vpack.c.b16 %v200, %v199
    %v210 = vpack.c.b16 %v202, %v201
    %v235 = vunpack.c.l.b16 %v155
    %v236 = vunpack.c.l.b16 %v156
    %v237 = vunpack.c.l.b16 %v157
    %v238 = vunpack.c.l.b16 %v158
    %v239 = vunpack.c.l.b16 %v159
    %v240 = vunpack.c.l.b16 %v160
    %v241 = vunpack.c.l.b16 %v161
    %v242 = vunpack.c.l.b16 %v162
    %v243 = vunpack.c.l.b16 %v163
    %v244 = vunpack.c.l.b16 %v164
    %v245 = vunpack.c.l.b16 %v165
    %v246 = vunpack.c.l.b16 %v166
    %v247 = vunpack.c.l.b16 %v167
    %v248 = vunpack.c.l.b16 %v168
    %v249 = vunpack.c.l.b16 %v169
    %v250 = vunpack.c.l.b16 %v170
    %v251 = vpack.c.b16 %v236, %v235
    %v252 = vpack.c.b16 %v238, %v237
    %v253 = vpack.c.b16 %v240, %v239
    %v254 = vpack.c.b16 %v242, %v241
    %v255 = vpack.c.b16 %v244, %v243
    %v256 = vpack.c.b16 %v246, %v245
    %v257 = vpack.c.b16 %v248, %v247
    %v258 = vpack.c.b16 %v250, %v249
    %267 = vmatprep.subr.bf16.mxu0 0
    %268 = vmatpush1.bf16.msra.mxu0 %v258
    %269 = vmatprep.subr.bf16.mxu0 0
    %270 = vmatpush1.bf16.msra.mxu0 %v257
    %271 = vmatprep.subr.bf16.mxu0 0
    %272 = vmatpush1.bf16.msra.mxu0 %v256
    %273 = vmatprep.subr.bf16.mxu0 0
    %274 = vmatpush1.bf16.msra.mxu0 %v255
    %275 = vmatprep.subr.bf16.mxu0 0
    %276 = vmatpush1.bf16.msra.mxu0 %v254
    %277 = vmatprep.subr.bf16.mxu0 0
    %278 = vmatpush1.bf16.msra.mxu0 %v253
    %279 = vmatprep.subr.bf16.mxu0 0
    %280 = vmatpush1.bf16.msra.mxu0 %v252
    %281 = vmatprep.subr.bf16.mxu0 0
    %282 = vmatpush1.bf16.msra.mxu0 %v251
    %283 = vmatprep.subr.bf16.mxu0 0
    %284 = vmatpush2.bf16.msra.mxu0 0
    %285 = vmatprep.subr.bf16.mxu0 0
    %286 = vmatpush2.bf16.msra.mxu0 0
    %287 = vmatprep.subr.bf16.mxu0 0
    %288 = vmatpush2.bf16.msra.mxu0 0
    %289 = vmatprep.subr.bf16.mxu0 0
    %290 = vmatpush2.bf16.msra.mxu0 0
    %291 = vmatprep.subr.bf16.mxu0 0
    %292 = vmatpush2.bf16.msra.mxu0 0
    %293 = vmatprep.subr.bf16.mxu0 0
    %294 = vmatpush2.bf16.msra.mxu0 0
    %295 = vmatprep.subr.bf16.mxu0 0
    %296 = vmatpush2.bf16.msra.mxu0 0
    %297 = vmatprep.subr.bf16.mxu0 0
    %298 = vmatpush2.bf16.msra.mxu0 0
    %299 = vmatprep.mubr.bf16.mxu0 0
    %300 = vmatmul.mubr.bf16.gmra.mxu0 %v203
    %v301 = vpop.f32.mrf.mxu0
    %v302 = vadd.f32 0.0, %v301
    %v303 = vpop.f32.mrf.mxu0
    %v304 = vpop.f32.mrf.mxu0
    %v305 = vadd.f32 0.0, %v304
    %v306 = vpop.f32.mrf.mxu0
    %307 = vmatprep.mubr.bf16.mxu0 0
    %308 = vmatmul.mubr.bf16.gmra.mxu0 %v204
    %v309 = vpop.f32.mrf.mxu0
    %v310 = vadd.f32 0.0, %v309
    %v311 = vpop.f32.mrf.mxu0
    %v312 = vpop.f32.mrf.mxu0
    %v313 = vadd.f32 0.0, %v312
    %v314 = vpop.f32.mrf.mxu0
    %315 = vmatprep.mubr.bf16.mxu0 0
    %316 = vmatmul.mubr.bf16.gmra.mxu0 %v205
    %v317 = vpop.f32.mrf.mxu0
    %v318 = vadd.f32 0.0, %v317
    %v319 = vpop.f32.mrf.mxu0
    %v320 = vpop.f32.mrf.mxu0
    %v321 = vadd.f32 0.0, %v320
    %v322 = vpop.f32.mrf.mxu0
    %323 = vmatprep.mubr.bf16.mxu0 0
    %324 = vmatmul.mubr.bf16.gmra.mxu0 %v206
    %v325 = vpop.f32.mrf.mxu0
    %v326 = vadd.f32 0.0, %v325
    %v327 = vpop.f32.mrf.mxu0
    %v328 = vpop.f32.mrf.mxu0
    %v329 = vadd.f32 0.0, %v328
    %v330 = vpop.f32.mrf.mxu0
    %331 = vmatprep.mubr.bf16.mxu0 0
    %332 = vmatmul.mubr.bf16.gmra.mxu0 %v207
    %v333 = vpop.f32.mrf.mxu0
    %v334 = vadd.f32 0.0, %v333
    %v335 = vpop.f32.mrf.mxu0
    %v336 = vpop.f32.mrf.mxu0
    %v337 = vadd.f32 0.0, %v336
    %v338 = vpop.f32.mrf.mxu0
    %339 = vmatprep.mubr.bf16.mxu0 0
    %340 = vmatmul.mubr.bf16.gmra.mxu0 %v208
    %v341 = vpop.f32.mrf.mxu0
    %v342 = vadd.f32 0.0, %v341
    %v343 = vpop.f32.mrf.mxu0
    %v344 = vpop.f32.mrf.mxu0
    %v345 = vadd.f32 0.0, %v344
    %v346 = vpop.f32.mrf.mxu0
    %347 = vmatprep.mubr.bf16.mxu0 0
    %348 = vmatmul.mubr.bf16.gmra.mxu0 %v209
    %v349 = vpop.f32.mrf.mxu0
    %v350 = vadd.f32 0.0, %v349
    %v351 = vpop.f32.mrf.mxu0
    %v352 = vpop.f32.mrf.mxu0
    %v353 = vadd.f32 0.0, %v352
    %v354 = vpop.f32.mrf.mxu0
    %355 = vmatprep.mubr.bf16.mxu0 0
    %356 = vmatmul.mubr.bf16.gmra.mxu0 %v210
    %v357 = vpop.f32.mrf.mxu0
    %v358 = vadd.f32 0.0, %v357
    %v359 = vpop.f32.mrf.mxu0
    %v360 = vpop.f32.mrf.mxu0
    %v361 = vadd.f32 0.0, %v360
    %v362 = vpop.f32.mrf.mxu0
    %363 = vdwg.mxu0
    %v364 = vrot.slane %v302, 1
    %v365 = vrot.slane %v305, 1
    %v366 = vrot.slane %v310, 1
    %v367 = vrot.slane %v313, 1
    %v368 = vrot.slane %v318, 1
    %v369 = vrot.slane %v321, 1
    %v370 = vrot.slane %v326, 1
    %v371 = vrot.slane %v329, 1
    %v372 = vrot.slane %v334, 1
    %v373 = vrot.slane %v337, 1
    %v374 = vrot.slane %v342, 1
    %v375 = vrot.slane %v345, 1
    %v376 = vrot.slane %v350, 1
    %v377 = vrot.slane %v353, 1
    %v378 = vrot.slane %v358, 1
    %v379 = vrot.slane %v361, 1
    %v380 = vrot.slane %v302, 2
    %v381 = vrot.slane %v305, 2
    %v382 = vrot.slane %v310, 2
    %v383 = vrot.slane %v313, 2
    %v384 = vrot.slane %v318, 2
    %v385 = vrot.slane %v321, 2
    %v386 = vrot.slane %v326, 2
    %v387 = vrot.slane %v329, 2
    %v388 = vrot.slane %v334, 2
    %v389 = vrot.slane %v337, 2
    %v390 = vrot.slane %v342, 2
    %v391 = vrot.slane %v345, 2
    %v392 = vrot.slane %v350, 2
    %v393 = vrot.slane %v353, 2
    %v394 = vrot.slane %v358, 2
    %v395 = vrot.slane %v361, 2
    %v396 = vrot.slane %v302, 3
    %v397 = vrot.slane %v305, 3
    %v398 = vrot.slane %v310, 3
    %v399 = vrot.slane %v313, 3
    %v400 = vrot.slane %v318, 3
    %v401 = vrot.slane %v321, 3
    %v402 = vrot.slane %v326, 3
    %v403 = vrot.slane %v329, 3
    %v404 = vrot.slane %v334, 3
    %v405 = vrot.slane %v337, 3
    %v406 = vrot.slane %v342, 3
    %v407 = vrot.slane %v345, 3
    %v408 = vrot.slane %v350, 3
    %v409 = vrot.slane %v353, 3
    %v410 = vrot.slane %v358, 3
    %v411 = vrot.slane %v361, 3
    %vm412 = vcmp.ge.s32.totalorder %v42, 0
    %vm413 = vcmp.lt.s32.totalorder %v42, 16
    %vm414 = vmand %vm412, %vm413
    %v415 = vsel %vm414, 2, 0
    %vm416 = vcmp.ge.s32.totalorder %v42, 16
    %vm417 = vcmp.lt.s32.totalorder %v42, 32
    %vm418 = vmand %vm416, %vm417
    %v419 = vsel %vm418, 3, %v415
    %vm420 = vcmp.ge.s32.totalorder %v42, 32
    %vm421 = vcmp.lt.s32.totalorder %v42, 48
    %vm422 = vmand %vm420, %vm421
    %v423 = vsel %vm422, 4, %v419
    %v424 = vsub.s32 8, %v423
    %441 = vrot.lane.b32.xlu0 %v364, 32
    %v442 = vpop.permute.xlu0 %441
    %443 = vrot.lane.b32.xlu0 %v365, 32
    %v444 = vpop.permute.xlu0 %443
    %445 = vrot.lane.b32.xlu0 %v366, 32
    %v446 = vpop.permute.xlu0 %445
    %447 = vrot.lane.b32.xlu0 %v367, 32
    %v448 = vpop.permute.xlu0 %447
    %449 = vrot.lane.b32.xlu0 %v368, 32
    %v450 = vpop.permute.xlu0 %449
    %451 = vrot.lane.b32.xlu0 %v369, 32
    %v452 = vpop.permute.xlu0 %451
    %453 = vrot.lane.b32.xlu0 %v370, 32
    %v454 = vpop.permute.xlu0 %453
    %455 = vrot.lane.b32.xlu0 %v371, 32
    %v456 = vpop.permute.xlu0 %455
    %457 = vrot.lane.b32.xlu0 %v372, 32
    %v458 = vpop.permute.xlu0 %457
    %459 = vrot.lane.b32.xlu0 %v373, 32
    %v460 = vpop.permute.xlu0 %459
    %461 = vrot.lane.b32.xlu0 %v374, 32
    %v462 = vpop.permute.xlu0 %461
    %463 = vrot.lane.b32.xlu0 %v375, 32
    %v464 = vpop.permute.xlu0 %463
    %465 = vrot.lane.b32.xlu0 %v376, 32
    %v466 = vpop.permute.xlu0 %465
    %467 = vrot.lane.b32.xlu0 %v377, 32
    %v468 = vpop.permute.xlu0 %467
    %469 = vrot.lane.b32.xlu0 %v378, 32
    %v470 = vpop.permute.xlu0 %469
    %471 = vrot.lane.b32.xlu0 %v379, 32
    %v472 = vpop.permute.xlu0 %471
    %505 = vrot.lane.b32.xlu0 %v380, 64
    %v506 = vpop.permute.xlu0 %505
    %507 = vrot.lane.b32.xlu0 %v381, 64
    %v508 = vpop.permute.xlu0 %507
    %509 = vrot.lane.b32.xlu0 %v382, 64
    %v510 = vpop.permute.xlu0 %509
    %511 = vrot.lane.b32.xlu0 %v383, 64
    %v512 = vpop.permute.xlu0 %511
    %513 = vrot.lane.b32.xlu0 %v384, 64
    %v514 = vpop.permute.xlu0 %513
    %515 = vrot.lane.b32.xlu0 %v385, 64
    %v516 = vpop.permute.xlu0 %515
    %517 = vrot.lane.b32.xlu0 %v386, 64
    %v518 = vpop.permute.xlu0 %517
    %519 = vrot.lane.b32.xlu0 %v387, 64
    %v520 = vpop.permute.xlu0 %519
    %521 = vrot.lane.b32.xlu0 %v388, 64
    %v522 = vpop.permute.xlu0 %521
    %523 = vrot.lane.b32.xlu0 %v389, 64
    %v524 = vpop.permute.xlu0 %523
    %525 = vrot.lane.b32.xlu0 %v390, 64
    %v526 = vpop.permute.xlu0 %525
    %527 = vrot.lane.b32.xlu0 %v391, 64
    %v528 = vpop.permute.xlu0 %527
    %529 = vrot.lane.b32.xlu0 %v392, 64
    %v530 = vpop.permute.xlu0 %529
    %531 = vrot.lane.b32.xlu0 %v393, 64
    %v532 = vpop.permute.xlu0 %531
    %533 = vrot.lane.b32.xlu0 %v394, 64
    %v534 = vpop.permute.xlu0 %533
    %535 = vrot.lane.b32.xlu0 %v395, 64
    %v536 = vpop.permute.xlu0 %535
    %569 = vrot.lane.b32.xlu0 %v396, 96
    %v570 = vpop.permute.xlu0 %569
    %571 = vrot.lane.b32.xlu0 %v397, 96
    %v572 = vpop.permute.xlu0 %571
    %573 = vrot.lane.b32.xlu0 %v398, 96
    %v574 = vpop.permute.xlu0 %573
    %575 = vrot.lane.b32.xlu0 %v399, 96
    %v576 = vpop.permute.xlu0 %575
    %577 = vrot.lane.b32.xlu0 %v400, 96
    %v578 = vpop.permute.xlu0 %577
    %579 = vrot.lane.b32.xlu0 %v401, 96
    %v580 = vpop.permute.xlu0 %579
    %581 = vrot.lane.b32.xlu0 %v402, 96
    %v582 = vpop.permute.xlu0 %581
    %583 = vrot.lane.b32.xlu0 %v403, 96
    %v584 = vpop.permute.xlu0 %583
    %585 = vrot.lane.b32.xlu0 %v404, 96
    %v586 = vpop.permute.xlu0 %585
    %587 = vrot.lane.b32.xlu0 %v405, 96
    %v588 = vpop.permute.xlu0 %587
    %589 = vrot.lane.b32.xlu0 %v406, 96
    %v590 = vpop.permute.xlu0 %589
    %591 = vrot.lane.b32.xlu0 %v407, 96
    %v592 = vpop.permute.xlu0 %591
    %593 = vrot.lane.b32.xlu0 %v408, 96
    %v594 = vpop.permute.xlu0 %593
    %595 = vrot.lane.b32.xlu0 %v409, 96
    %v596 = vpop.permute.xlu0 %595
    %597 = vrot.lane.b32.xlu0 %v410, 96
    %v598 = vpop.permute.xlu0 %597
    %599 = vrot.lane.b32.xlu0 %v411, 96
    %v600 = vpop.permute.xlu0 %599
    %vm617 = vcmask 261120
    %v618 = vsel %vm617, %v302, %v442
    %v619 = vsel %vm617, %v305, %v444
    %v620 = vsel %vm617, %v310, %v446
    %v621 = vsel %vm617, %v313, %v448
    %v622 = vsel %vm617, %v318, %v450
    %v623 = vsel %vm617, %v321, %v452
    %v624 = vsel %vm617, %v326, %v454
    %v625 = vsel %vm617, %v329, %v456
    %v626 = vsel %vm617, %v334, %v458
    %v627 = vsel %vm617, %v337, %v460
    %v628 = vsel %vm617, %v342, %v462
    %v629 = vsel %vm617, %v345, %v464
    %v630 = vsel %vm617, %v350, %v466
    %v631 = vsel %vm617, %v353, %v468
    %v632 = vsel %vm617, %v358, %v470
    %v633 = vsel %vm617, %v361, %v472
    %vm634 = vcmask 523264
    %v635 = vsel %vm634, %v618, %v506
    %v636 = vsel %vm634, %v619, %v508
    %v637 = vsel %vm634, %v620, %v510
    %v638 = vsel %vm634, %v621, %v512
    %v639 = vsel %vm634, %v622, %v514
    %v640 = vsel %vm634, %v623, %v516
    %v641 = vsel %vm634, %v624, %v518
    %v642 = vsel %vm634, %v625, %v520
    %v643 = vsel %vm634, %v626, %v522
    %v644 = vsel %vm634, %v627, %v524
    %v645 = vsel %vm634, %v628, %v526
    %v646 = vsel %vm634, %v629, %v528
    %v647 = vsel %vm634, %v630, %v530
    %v648 = vsel %vm634, %v631, %v532
    %v649 = vsel %vm634, %v632, %v534
    %v650 = vsel %vm634, %v633, %v536
    %vm651 = vcmask 785408
    %v652 = vsel %vm651, %v635, %v570
    %v653 = vsel %vm651, %v636, %v572
    %v654 = vsel %vm651, %v637, %v574
    %v655 = vsel %vm651, %v638, %v576
    %v656 = vsel %vm651, %v639, %v578
    %v657 = vsel %vm651, %v640, %v580
    %v658 = vsel %vm651, %v641, %v582
    %v659 = vsel %vm651, %v642, %v584
    %v660 = vsel %vm651, %v643, %v586
    %v661 = vsel %vm651, %v644, %v588
    %v662 = vsel %vm651, %v645, %v590
    %v663 = vsel %vm651, %v646, %v592
    %v664 = vsel %vm651, %v647, %v594
    %v665 = vsel %vm651, %v648, %v596
    %v666 = vsel %vm651, %v649, %v598
    %v667 = vsel %vm651, %v650, %v600
    %v668 = vpack.c.bf16 %v653, %v652
    %v669 = vpack.c.bf16 %v655, %v654
    %v670 = vpack.c.bf16 %v657, %v656
    %v671 = vpack.c.bf16 %v659, %v658
    %v672 = vpack.c.bf16 %v661, %v660
    %v673 = vpack.c.bf16 %v663, %v662
    %v674 = vpack.c.bf16 %v665, %v664
    %v675 = vpack.c.bf16 %v667, %v666
    %v676 = vld [vmem:[%s2] sm:$0xf]
    %v677 = vld [vmem:[%s2 + $0x4] sm:$0xf]
    %v678 = vld [vmem:[%s2 + $0x8] sm:$0xf]
    %v679 = vld [vmem:[%s2 + $0xc] sm:$0xf]
    %v680 = vld [vmem:[%s2 + $0x10] sm:$0xf]
    %v681 = vld [vmem:[%s2 + $0x14] sm:$0xf]
    %v682 = vld [vmem:[%s2 + $0x18] sm:$0xf]
    %v683 = vld [vmem:[%s2 + $0x1c] sm:$0xf]
    %v684 = vld [vmem:[%s2 + $0x20] sm:$0xf]
    %v685 = vld [vmem:[%s2 + $0x24] sm:$0xf]
    %v686 = vld [vmem:[%s2 + $0x28] sm:$0xf]
    %v687 = vld [vmem:[%s2 + $0x2c] sm:$0xf]
    %v688 = vld [vmem:[%s2 + $0x30] sm:$0xf]
    %v689 = vld [vmem:[%s2 + $0x34] sm:$0xf]
    %v690 = vld [vmem:[%s2 + $0x38] sm:$0xf]
    %v691 = vld [vmem:[%s2 + $0x3c] sm:$0xf]
    %v708 = vunpack.c.l.b16 %v676
    %v709 = vunpack.c.l.b16 %v677
    %v710 = vunpack.c.l.b16 %v678
    %v711 = vunpack.c.l.b16 %v679
    %v712 = vunpack.c.l.b16 %v680
    %v713 = vunpack.c.l.b16 %v681
    %v714 = vunpack.c.l.b16 %v682
    %v715 = vunpack.c.l.b16 %v683
    %v716 = vunpack.c.l.b16 %v684
    %v717 = vunpack.c.l.b16 %v685
    %v718 = vunpack.c.l.b16 %v686
    %v719 = vunpack.c.l.b16 %v687
    %v720 = vunpack.c.l.b16 %v688
    %v721 = vunpack.c.l.b16 %v689
    %v722 = vunpack.c.l.b16 %v690
    %v723 = vunpack.c.l.b16 %v691
    %v724 = vpack.c.b16 %v709, %v708
    %v725 = vpack.c.b16 %v711, %v710
    %v726 = vpack.c.b16 %v713, %v712
    %v727 = vpack.c.b16 %v715, %v714
    %v728 = vpack.c.b16 %v717, %v716
    %v729 = vpack.c.b16 %v719, %v718
    %v730 = vpack.c.b16 %v721, %v720
    %v731 = vpack.c.b16 %v723, %v722
    %740 = vmatprep.subr.bf16.mxu0 0
    %741 = vmatpush1.bf16.msra.mxu0 %v731
    %742 = vmatprep.subr.bf16.mxu0 0
    %743 = vmatpush1.bf16.msra.mxu0 %v730
    %744 = vmatprep.subr.bf16.mxu0 0
    %745 = vmatpush1.bf16.msra.mxu0 %v729
    %746 = vmatprep.subr.bf16.mxu0 0
    %747 = vmatpush1.bf16.msra.mxu0 %v728
    %748 = vmatprep.subr.bf16.mxu0 0
    %749 = vmatpush1.bf16.msra.mxu0 %v727
    %750 = vmatprep.subr.bf16.mxu0 0
    %751 = vmatpush1.bf16.msra.mxu0 %v726
    %752 = vmatprep.subr.bf16.mxu0 0
    %753 = vmatpush1.bf16.msra.mxu0 %v725
    %754 = vmatprep.subr.bf16.mxu0 0
    %755 = vmatpush1.bf16.msra.mxu0 %v724
    %756 = vmatprep.subr.bf16.mxu0 0
    %757 = vmatpush2.bf16.msra.mxu0 0
    %758 = vmatprep.subr.bf16.mxu0 0
    %759 = vmatpush2.bf16.msra.mxu0 0
    %760 = vmatprep.subr.bf16.mxu0 0
    %761 = vmatpush2.bf16.msra.mxu0 0
    %762 = vmatprep.subr.bf16.mxu0 0
    %763 = vmatpush2.bf16.msra.mxu0 0
    %764 = vmatprep.subr.bf16.mxu0 0
    %765 = vmatpush2.bf16.msra.mxu0 0
    %766 = vmatprep.subr.bf16.mxu0 0
    %767 = vmatpush2.bf16.msra.mxu0 0
    %768 = vmatprep.subr.bf16.mxu0 0
    %769 = vmatpush2.bf16.msra.mxu0 0
    %770 = vmatprep.subr.bf16.mxu0 0
    %771 = vmatpush2.bf16.msra.mxu0 0
    %772 = vmatprep.mubr.bf16.mxu0 0
    %773 = vmatmul.mubr.bf16.gmra.mxu0 %v668
    %v774 = vpop.f32.mrf.mxu0
    %v775 = vadd.f32 0.0, %v774
    %v776 = vpop.f32.mrf.mxu0
    %v777 = vpop.f32.mrf.mxu0
    %v778 = vadd.f32 0.0, %v777
    %v779 = vpop.f32.mrf.mxu0
    %780 = vmatprep.mubr.bf16.mxu0 0
    %781 = vmatmul.mubr.bf16.gmra.mxu0 %v669
    %v782 = vpop.f32.mrf.mxu0
    %v783 = vadd.f32 0.0, %v782
    %v784 = vpop.f32.mrf.mxu0
    %v785 = vpop.f32.mrf.mxu0
    %v786 = vadd.f32 0.0, %v785
    %v787 = vpop.f32.mrf.mxu0
    %788 = vmatprep.mubr.bf16.mxu0 0
    %789 = vmatmul.mubr.bf16.gmra.mxu0 %v670
    %v790 = vpop.f32.mrf.mxu0
    %v791 = vadd.f32 0.0, %v790
    %v792 = vpop.f32.mrf.mxu0
    %v793 = vpop.f32.mrf.mxu0
    %v794 = vadd.f32 0.0, %v793
    %v795 = vpop.f32.mrf.mxu0
    %796 = vmatprep.mubr.bf16.mxu0 0
    %797 = vmatmul.mubr.bf16.gmra.mxu0 %v671
    %v798 = vpop.f32.mrf.mxu0
    %v799 = vadd.f32 0.0, %v798
    %v800 = vpop.f32.mrf.mxu0
    %v801 = vpop.f32.mrf.mxu0
    %v802 = vadd.f32 0.0, %v801
    %v803 = vpop.f32.mrf.mxu0
    %804 = vmatprep.mubr.bf16.mxu0 0
    %805 = vmatmul.mubr.bf16.gmra.mxu0 %v672
    %v806 = vpop.f32.mrf.mxu0
    %v807 = vadd.f32 0.0, %v806
    %v808 = vpop.f32.mrf.mxu0
    %v809 = vpop.f32.mrf.mxu0
    %v810 = vadd.f32 0.0, %v809
    %v811 = vpop.f32.mrf.mxu0
    %812 = vmatprep.mubr.bf16.mxu0 0
    %813 = vmatmul.mubr.bf16.gmra.mxu0 %v673
    %v814 = vpop.f32.mrf.mxu0
    %v815 = vadd.f32 0.0, %v814
    %v816 = vpop.f32.mrf.mxu0
    %v817 = vpop.f32.mrf.mxu0
    %v818 = vadd.f32 0.0, %v817
    %v819 = vpop.f32.mrf.mxu0
    %820 = vmatprep.mubr.bf16.mxu0 0
    %821 = vmatmul.mubr.bf16.gmra.mxu0 %v674
    %v822 = vpop.f32.mrf.mxu0
    %v823 = vadd.f32 0.0, %v822
    %v824 = vpop.f32.mrf.mxu0
    %v825 = vpop.f32.mrf.mxu0
    %v826 = vadd.f32 0.0, %v825
    %v827 = vpop.f32.mrf.mxu0
    %828 = vmatprep.mubr.bf16.mxu0 0
    %829 = vmatmul.mubr.bf16.gmra.mxu0 %v675
    %v830 = vpop.f32.mrf.mxu0
    %v831 = vadd.f32 0.0, %v830
    %v832 = vpop.f32.mrf.mxu0
    %v833 = vpop.f32.mrf.mxu0
    %v834 = vadd.f32 0.0, %v833
    %v835 = vpop.f32.mrf.mxu0
    %836 = vdwg.mxu0
    %v837 = vlaneseq
    %v838 = vshrl.u32 %v837, 7
    %vm839 = vcmp.le.s32.totalorder %v838, %v424
    %v840 = vsel %vm839, 1, 0
    %vm841 = vcmp.eq.s32.totalorder %v840, 1
    %v842 = vsel %vm841, %v775, -1e+30
    %v843 = vsel %vm841, %v778, -1e+30
    %v844 = vsel %vm841, %v783, -1e+30
    %v845 = vsel %vm841, %v786, -1e+30
    %v846 = vsel %vm841, %v791, -1e+30
    %v847 = vsel %vm841, %v794, -1e+30
    %v848 = vsel %vm841, %v799, -1e+30
    %v849 = vsel %vm841, %v802, -1e+30
    %v850 = vsel %vm841, %v807, -1e+30
    %v851 = vsel %vm841, %v810, -1e+30
    %v852 = vsel %vm841, %v815, -1e+30
    %v853 = vsel %vm841, %v818, -1e+30
    %v854 = vsel %vm841, %v823, -1e+30
    %v855 = vsel %vm841, %v826, -1e+30
    %v856 = vsel %vm841, %v831, -1e+30
    %v857 = vsel %vm841, %v834, -1e+30
    %v858 = vrot.slane %v842, 4
    %v859 = vmax.f32 %v842, %v858
    %v860 = vrot.slane %v859, 2
    %v861 = vmax.f32 %v859, %v860
    %v862 = vrot.slane %v861, 1
    %v863 = vmax.f32 %v861, %v862
    %v864 = vrot.slane %v843, 4
    %v865 = vmax.f32 %v843, %v864
    %v866 = vrot.slane %v865, 2
    %v867 = vmax.f32 %v865, %v866
    %v868 = vrot.slane %v867, 1
    %v869 = vmax.f32 %v867, %v868
    %v870 = vrot.slane %v844, 4
    %v871 = vmax.f32 %v844, %v870
    %v872 = vrot.slane %v871, 2
    %v873 = vmax.f32 %v871, %v872
    %v874 = vrot.slane %v873, 1
    %v875 = vmax.f32 %v873, %v874
    %v876 = vrot.slane %v845, 4
    %v877 = vmax.f32 %v845, %v876
    %v878 = vrot.slane %v877, 2
    %v879 = vmax.f32 %v877, %v878
    %v880 = vrot.slane %v879, 1
    %v881 = vmax.f32 %v879, %v880
    %v882 = vrot.slane %v846, 4
    %v883 = vmax.f32 %v846, %v882
    %v884 = vrot.slane %v883, 2
    %v885 = vmax.f32 %v883, %v884
    %v886 = vrot.slane %v885, 1
    %v887 = vmax.f32 %v885, %v886
    %v888 = vrot.slane %v847, 4
    %v889 = vmax.f32 %v847, %v888
    %v890 = vrot.slane %v889, 2
    %v891 = vmax.f32 %v889, %v890
    %v892 = vrot.slane %v891, 1
    %v893 = vmax.f32 %v891, %v892
    %v894 = vrot.slane %v848, 4
    %v895 = vmax.f32 %v848, %v894
    %v896 = vrot.slane %v895, 2
    %v897 = vmax.f32 %v895, %v896
    %v898 = vrot.slane %v897, 1
    %v899 = vmax.f32 %v897, %v898
    %v900 = vrot.slane %v849, 4
    %v901 = vmax.f32 %v849, %v900
    %v902 = vrot.slane %v901, 2
    %v903 = vmax.f32 %v901, %v902
    %v904 = vrot.slane %v903, 1
    %v905 = vmax.f32 %v903, %v904
    %v906 = vrot.slane %v850, 4
    %v907 = vmax.f32 %v850, %v906
    %v908 = vrot.slane %v907, 2
    %v909 = vmax.f32 %v907, %v908
    %v910 = vrot.slane %v909, 1
    %v911 = vmax.f32 %v909, %v910
    %v912 = vrot.slane %v851, 4
    %v913 = vmax.f32 %v851, %v912
    %v914 = vrot.slane %v913, 2
    %v915 = vmax.f32 %v913, %v914
    %v916 = vrot.slane %v915, 1
    %v917 = vmax.f32 %v915, %v916
    %v918 = vrot.slane %v852, 4
    %v919 = vmax.f32 %v852, %v918
    %v920 = vrot.slane %v919, 2
    %v921 = vmax.f32 %v919, %v920
    %v922 = vrot.slane %v921, 1
    %v923 = vmax.f32 %v921, %v922
    %v924 = vrot.slane %v853, 4
    %v925 = vmax.f32 %v853, %v924
    %v926 = vrot.slane %v925, 2
    %v927 = vmax.f32 %v925, %v926
    %v928 = vrot.slane %v927, 1
    %v929 = vmax.f32 %v927, %v928
    %v930 = vrot.slane %v854, 4
    %v931 = vmax.f32 %v854, %v930
    %v932 = vrot.slane %v931, 2
    %v933 = vmax.f32 %v931, %v932
    %v934 = vrot.slane %v933, 1
    %v935 = vmax.f32 %v933, %v934
    %v936 = vrot.slane %v855, 4
    %v937 = vmax.f32 %v855, %v936
    %v938 = vrot.slane %v937, 2
    %v939 = vmax.f32 %v937, %v938
    %v940 = vrot.slane %v939, 1
    %v941 = vmax.f32 %v939, %v940
    %v942 = vrot.slane %v856, 4
    %v943 = vmax.f32 %v856, %v942
    %v944 = vrot.slane %v943, 2
    %v945 = vmax.f32 %v943, %v944
    %v946 = vrot.slane %v945, 1
    %v947 = vmax.f32 %v945, %v946
    %v948 = vrot.slane %v857, 4
    %v949 = vmax.f32 %v857, %v948
    %v950 = vrot.slane %v949, 2
    %v951 = vmax.f32 %v949, %v950
    %v952 = vrot.slane %v951, 1
    %v953 = vmax.f32 %v951, %v952
    %v954 = vmax.f32 %v863, -1e+30
    %v955 = vmax.f32 %v869, -1e+30
    %v956 = vmax.f32 %v875, -1e+30
    %v957 = vmax.f32 %v881, -1e+30
    %v958 = vmax.f32 %v887, -1e+30
    %v959 = vmax.f32 %v893, -1e+30
    %v960 = vmax.f32 %v899, -1e+30
    %v961 = vmax.f32 %v905, -1e+30
    %v962 = vmax.f32 %v911, -1e+30
    %v963 = vmax.f32 %v917, -1e+30
    %v964 = vmax.f32 %v923, -1e+30
    %v965 = vmax.f32 %v929, -1e+30
    %v966 = vmax.f32 %v935, -1e+30
    %v967 = vmax.f32 %v941, -1e+30
    %v968 = vmax.f32 %v947, -1e+30
    %v969 = vmax.f32 %v953, -1e+30
    %v970 = vld [vmem:[%s3] sm:$0x1]
    %v972 = vlaneseq
    %v973 = vshrl.u32 %v972, 7
    %v974 = vsub.s32 0, %v973
    %v975 = vrot.slane %v970, %v974
    %v977 = vadd.f32 %v954, %v975
    %v978 = vadd.f32 %v955, %v975
    %v979 = vadd.f32 %v956, %v975
    %v980 = vadd.f32 %v957, %v975
    %v981 = vadd.f32 %v958, %v975
    %v982 = vadd.f32 %v959, %v975
    %v983 = vadd.f32 %v960, %v975
    %v984 = vadd.f32 %v961, %v975
    %v985 = vadd.f32 %v962, %v975
    %v986 = vadd.f32 %v963, %v975
    %v987 = vadd.f32 %v964, %v975
    %v988 = vadd.f32 %v965, %v975
    %v989 = vadd.f32 %v966, %v975
    %v990 = vadd.f32 %v967, %v975
    %v991 = vadd.f32 %v968, %v975
    %v992 = vadd.f32 %v969, %v975
    %v993 = vmax.f32 %v977, 0.0
    %v994 = vmax.f32 %v978, 0.0
    %v995 = vmax.f32 %v979, 0.0
    %v996 = vmax.f32 %v980, 0.0
    %v997 = vmax.f32 %v981, 0.0
    %v998 = vmax.f32 %v982, 0.0
    %v999 = vmax.f32 %v983, 0.0
    %v1000 = vmax.f32 %v984, 0.0
    %v1001 = vmax.f32 %v985, 0.0
    %v1002 = vmax.f32 %v986, 0.0
    %v1003 = vmax.f32 %v987, 0.0
    %v1004 = vmax.f32 %v988, 0.0
    %v1005 = vmax.f32 %v989, 0.0
    %v1006 = vmax.f32 %v990, 0.0
    %v1007 = vmax.f32 %v991, 0.0
    %v1008 = vmax.f32 %v992, 0.0
    %v1009 = vpack.c.bf16 %v993, %v993
    %v1010 = vpack.c.bf16 %v994, %v994
    %v1011 = vpack.c.bf16 %v995, %v995
    %v1012 = vpack.c.bf16 %v996, %v996
    %v1013 = vpack.c.bf16 %v997, %v997
    %v1014 = vpack.c.bf16 %v998, %v998
    %v1015 = vpack.c.bf16 %v999, %v999
    %v1016 = vpack.c.bf16 %v1000, %v1000
    %v1017 = vpack.c.bf16 %v1001, %v1001
    %v1018 = vpack.c.bf16 %v1002, %v1002
    %v1019 = vpack.c.bf16 %v1003, %v1003
    %v1020 = vpack.c.bf16 %v1004, %v1004
    %v1021 = vpack.c.bf16 %v1005, %v1005
    %v1022 = vpack.c.bf16 %v1006, %v1006
    %v1023 = vpack.c.bf16 %v1007, %v1007
    %v1024 = vpack.c.bf16 %v1008, %v1008
    %v1025 = vld [vmem:[%s4] sm:$0xf]
    %v1026 = vld [vmem:[%s4 + $0x4] sm:$0xf]
    %v1027 = vld [vmem:[%s4 + $0x8] sm:$0xf]
    %v1028 = vld [vmem:[%s4 + $0xc] sm:$0xf]
    %v1029 = vld [vmem:[%s4 + $0x10] sm:$0xf]
    %v1030 = vld [vmem:[%s4 + $0x14] sm:$0xf]
    %v1031 = vld [vmem:[%s4 + $0x18] sm:$0xf]
    %v1032 = vld [vmem:[%s4 + $0x1c] sm:$0xf]
    %v1033 = vld [vmem:[%s4 + $0x20] sm:$0xf]
    %v1034 = vld [vmem:[%s4 + $0x24] sm:$0xf]
    %v1035 = vld [vmem:[%s4 + $0x28] sm:$0xf]
    %v1036 = vld [vmem:[%s4 + $0x2c] sm:$0xf]
    %v1037 = vld [vmem:[%s4 + $0x30] sm:$0xf]
    %v1038 = vld [vmem:[%s4 + $0x34] sm:$0xf]
    %v1039 = vld [vmem:[%s4 + $0x38] sm:$0xf]
    %v1040 = vld [vmem:[%s4 + $0x3c] sm:$0xf]
    %v1041 = vld [vmem:[%s5] sm:$0x1]
    %v1043 = vlaneseq
    %v1044 = vshrl.u32 %v1043, 7
    %v1045 = vsub.s32 0, %v1044
    %v1046 = vrot.slane %v1041, %v1045
    %v1064 = vunpack.c.l.b16 %v1009
    %v1065 = vunpack.c.l.b16 %v1010
    %v1066 = vunpack.c.l.b16 %v1011
    %v1067 = vunpack.c.l.b16 %v1012
    %v1068 = vunpack.c.l.b16 %v1013
    %v1069 = vunpack.c.l.b16 %v1014
    %v1070 = vunpack.c.l.b16 %v1015
    %v1071 = vunpack.c.l.b16 %v1016
    %v1072 = vunpack.c.l.b16 %v1017
    %v1073 = vunpack.c.l.b16 %v1018
    %v1074 = vunpack.c.l.b16 %v1019
    %v1075 = vunpack.c.l.b16 %v1020
    %v1076 = vunpack.c.l.b16 %v1021
    %v1077 = vunpack.c.l.b16 %v1022
    %v1078 = vunpack.c.l.b16 %v1023
    %v1079 = vunpack.c.l.b16 %v1024
    %v1080 = vrot.slane %v1065, 7
    %vm1081 = vcmask 1041409
    %v1082 = vsel %vm1081, %v1080, %v1064
    %v1083 = vrot.slane %v1066, 6
    %vm1084 = vcmask 1042434
    %v1085 = vsel %vm1084, %v1083, %v1082
    %v1086 = vrot.slane %v1067, 5
    %vm1087 = vcmask 1043459
    %v1088 = vsel %vm1087, %v1086, %v1085
    %v1089 = vrot.slane %v1068, 4
    %vm1090 = vcmask 1044484
    %v1091 = vsel %vm1090, %v1089, %v1088
    %v1092 = vrot.slane %v1069, 3
    %vm1093 = vcmask 1045509
    %v1094 = vsel %vm1093, %v1092, %v1091
    %v1095 = vrot.slane %v1070, 2
    %vm1096 = vcmask 1046534
    %v1097 = vsel %vm1096, %v1095, %v1094
    %v1098 = vrot.slane %v1071, 1
    %vm1099 = vcmask 1047559
    %v1100 = vsel %vm1099, %v1098, %v1097
    %v1101 = vrot.slane %v1073, 7
    %v1102 = vsel %vm1081, %v1101, %v1072
    %v1103 = vrot.slane %v1074, 6
    %v1104 = vsel %vm1084, %v1103, %v1102
    %v1105 = vrot.slane %v1075, 5
    %v1106 = vsel %vm1087, %v1105, %v1104
    %v1107 = vrot.slane %v1076, 4
    %v1108 = vsel %vm1090, %v1107, %v1106
    %v1109 = vrot.slane %v1077, 3
    %v1110 = vsel %vm1093, %v1109, %v1108
    %v1111 = vrot.slane %v1078, 2
    %v1112 = vsel %vm1096, %v1111, %v1110
    %v1113 = vrot.slane %v1079, 1
    %v1114 = vsel %vm1099, %v1113, %v1112
    %v1115 = vpack.c.b16 %v1114, %v1100
    %v1133 = vunpack.c.l.b16 %v1025
    %v1134 = vunpack.c.l.b16 %v1026
    %v1135 = vunpack.c.l.b16 %v1027
    %v1136 = vunpack.c.l.b16 %v1028
    %v1137 = vunpack.c.l.b16 %v1029
    %v1138 = vunpack.c.l.b16 %v1030
    %v1139 = vunpack.c.l.b16 %v1031
    %v1140 = vunpack.c.l.b16 %v1032
    %v1141 = vunpack.c.l.b16 %v1033
    %v1142 = vunpack.c.l.b16 %v1034
    %v1143 = vunpack.c.l.b16 %v1035
    %v1144 = vunpack.c.l.b16 %v1036
    %v1145 = vunpack.c.l.b16 %v1037
    %v1146 = vunpack.c.l.b16 %v1038
    %v1147 = vunpack.c.l.b16 %v1039
    %v1148 = vunpack.c.l.b16 %v1040
    %v1149 = vpack.c.b16 %v1134, %v1133
    %v1150 = vpack.c.b16 %v1136, %v1135
    %v1151 = vpack.c.b16 %v1138, %v1137
    %v1152 = vpack.c.b16 %v1140, %v1139
    %v1153 = vpack.c.b16 %v1142, %v1141
    %v1154 = vpack.c.b16 %v1144, %v1143
    %v1155 = vpack.c.b16 %v1146, %v1145
    %v1156 = vpack.c.b16 %v1148, %v1147
    %1165 = vmatprep.subr.bf16.mxu0 0
    %1166 = vmatpush1.bf16.msra.mxu0 %v1156
    %1167 = vmatprep.subr.bf16.mxu0 0
    %1168 = vmatpush1.bf16.msra.mxu0 %v1155
    %1169 = vmatprep.subr.bf16.mxu0 0
    %1170 = vmatpush1.bf16.msra.mxu0 %v1154
    %1171 = vmatprep.subr.bf16.mxu0 0
    %1172 = vmatpush1.bf16.msra.mxu0 %v1153
    %1173 = vmatprep.subr.bf16.mxu0 0
    %1174 = vmatpush1.bf16.msra.mxu0 %v1152
    %1175 = vmatprep.subr.bf16.mxu0 0
    %1176 = vmatpush1.bf16.msra.mxu0 %v1151
    %1177 = vmatprep.subr.bf16.mxu0 0
    %1178 = vmatpush1.bf16.msra.mxu0 %v1150
    %1179 = vmatprep.subr.bf16.mxu0 0
    %1180 = vmatpush1.bf16.msra.mxu0 %v1149
    %1181 = vmatprep.subr.bf16.mxu0 0
    %1182 = vmatpush2.bf16.msra.mxu0 0
    %1183 = vmatprep.subr.bf16.mxu0 0
    %1184 = vmatpush2.bf16.msra.mxu0 0
    %1185 = vmatprep.subr.bf16.mxu0 0
    %1186 = vmatpush2.bf16.msra.mxu0 0
    %1187 = vmatprep.subr.bf16.mxu0 0
    %1188 = vmatpush2.bf16.msra.mxu0 0
    %1189 = vmatprep.subr.bf16.mxu0 0
    %1190 = vmatpush2.bf16.msra.mxu0 0
    %1191 = vmatprep.subr.bf16.mxu0 0
    %1192 = vmatpush2.bf16.msra.mxu0 0
    %1193 = vmatprep.subr.bf16.mxu0 0
    %1194 = vmatpush2.bf16.msra.mxu0 0
    %1195 = vmatprep.subr.bf16.mxu0 0
    %1196 = vmatpush2.bf16.msra.mxu0 0
    %1197 = vmatprep.mubr.bf16.mxu0 0
    %1198 = vmatmul.mubr.bf16.gmra.mxu0 %v1115
    %v1199 = vpop.f32.mrf.mxu0
    %v1200 = vadd.f32 %v1046, %v1199
    %v1201 = vpop.f32.mrf.mxu0
    %v1202 = vpop.f32.mrf.mxu0
    %v1203 = vadd.f32 %v1046, %v1202
    %v1204 = vpop.f32.mrf.mxu0
    %1205 = vdwg.mxu0
    %v1206 = vpack.c.bf16 %v1203, %v1200
    %v1208 = vunpack.c.l.b16 %v1206
    %v1209 = vunpack.c.h.b16 %v1206
    %v1210 = vpack.c.b16 %v1208, %v1208
    %v1211 = vpack.c.b16 %v1209, %v1209
    %1214 = vst [vmem:[#allocation2] sm:$0xf] %v1210
    %1215 = vst [vmem:[#allocation2 + $0x4] sm:$0xf] %v1211
    // Predicated region
    $region26: #{tpu_custom_call.1} parent=1 // pred_check
      _
    $region27: #{tpu_custom_call.1} parent=1 // pred_check_branch
      %1217 = sbr.rel (0) target = $region29
    $region28: #{tpu_custom_call.1} parent=1 // pred_region
      %s1219 = ssub.s32 128, 128
      %1220 = vsyncadd [#allocation3], %s1219
      %s1221 = sshll.u32 [#allocation2], 4
      %s1222 = int_to_ptr.vmem [resolvable:$true] %s1221
      %1227 = dma.vmem_to_hbm [thread:$0]  %s1222, 128, %s6, [#allocation3], 64, 64, 4
    $region29: #{tpu_custom_call.1} parent=1 // pred_fallthru
      _
    // Predicated region
    $region30: #{tpu_custom_call.1} parent=1 // pred_check
      _
    $region31: #{tpu_custom_call.1} parent=1 // pred_check_branch
      %1229 = sbr.rel (0) target = $region33
    $region32: #{tpu_custom_call.1} parent=1 // pred_region
      %1230 = dma.done [#allocation3], 128
    $region33: #{tpu_custom_call.1} parent=1 // pred_fallthru
      _
    %1231 = vsyncpa [#allocation3], 1

</llo_original>
